<compile_context>
chip_gen: v5e
topology: v5e:2x2
jax: 0.10.0
libtpu: 0.0.40
codegen_flags: <defaults>
</compile_context>

<pallas_src>
import functools

import jax
import jax.numpy as jnp
from jax.experimental import pallas as pl
from jax.experimental.pallas import tpu as pltpu


def _cdiv(a, b):
    return (a + b - 1) // b


def _round_up(x, m):
    return ((x + m - 1) // m) * m


def _mse_kernel(ref_ref, gen_ref, o_ref, acc_ref, *, tk, inv_d, lanes_last_tile):
    """One (row-tile, reduction-tile) grid step of the streaming MSE reduction.

    acc_ref: (tn, 128) f32 per-lane partial sums, resident across the reduction
    axis (innermost grid axis).  lanes_last_tile is the number of valid lanes
    in the final reduction tile (== tk when d % tk == 0).
    """
    k = pl.program_id(1)
    last_k = pl.num_programs(1) - 1

    @pl.when(k == 0)
    def _():
        acc_ref[...] = jnp.zeros_like(acc_ref)

    def accum_chunk(c, valid_lanes=None):
        # Fused per-chunk pipeline: load 128 lanes of each operand, cast to f32
        # (bf16-safe) BEFORE subtracting, square, and accumulate directly into
        # the VMEM accumulator.  No full-tile temporaries are materialized and
        # there is no long carried-add chain (vreg pressure stays bounded).
        r = ref_ref[:, c * 128:(c + 1) * 128].astype(jnp.float32)
        g = gen_ref[:, c * 128:(c + 1) * 128].astype(jnp.float32)
        diff = r - g
        if valid_lanes is not None:
            lane = jax.lax.broadcasted_iota(jnp.int32, diff.shape, 1)
            diff = jnp.where(lane < valid_lanes, diff, 0.0)
        acc_ref[...] += diff * diff

    if tk % 128 == 0:
        n_chunks = tk // 128
        if lanes_last_tile == tk:
            # Reduction dim divides evenly: no masking anywhere.
            for c in range(n_chunks):
                accum_chunk(c)
        else:
            full_last = lanes_last_tile // 128   # fully valid chunks, last tile
            partial = lanes_last_tile % 128      # valid lanes of boundary chunk

            @pl.when(k < last_k)
            def _():
                for c in range(n_chunks):
                    accum_chunk(c)

            @pl.when(k == last_k)
            def _():
                for c in range(full_last):
                    accum_chunk(c)
                if partial:
                    accum_chunk(full_last, valid_lanes=partial)
                # Chunks entirely past the row length are skipped.
    else:
        # Short rows whose length is not 128-aligned: a single full-row block
        # (tiny), so the one-shot path is cheapest.
        r = ref_ref[...].astype(jnp.float32)
        g = gen_ref[...].astype(jnp.float32)
        diff = r - g
        acc_ref[:, 0:1] += jnp.sum(diff * diff, axis=-1, keepdims=True)

    @pl.when(k == last_k)
    def _():
        o_ref[...] = (
            jnp.sum(acc_ref[...], axis=-1, keepdims=True) * inv_d
        ).astype(o_ref.dtype)


def mse(reference_observations, generated_observations, *, tn=256, tk=4096):
    """Pallas equivalent of torch.mean((ref - gen)**2, dim=[2, 3, 4])."""
    assert reference_observations.shape == generated_observations.shape
    assert reference_observations.dtype == generated_observations.dtype
    bs, obs, c, h, w = reference_observations.shape
    d = c * h * w
    n = bs * obs

    # Flatten each observation to a row.  No dtype cast, no padding: the f32
    # cast and the tail masking happen per 128-lane chunk inside the kernel.
    r = reference_observations.reshape(n, d)
    g = generated_observations.reshape(n, d)
    elt = jnp.dtype(r.dtype).itemsize

    # Sub-32-bit dtypes pack along sublanes: min row tile 16 (bf16) / 32 (int8).
    sub_mult = {4: 8, 2: 16, 1: 32}.get(elt, 8)

    # Per-generation VMEM capacity (v7x: 64 MiB/TC; v5e/v6e: 128 MiB).
    try:
        phys_vmem = int(pltpu.get_tpu_info().vmem_capacity_bytes)
    except Exception:
        phys_vmem = 64 << 20            # conservative default (v7x per-TC)
    small_vmem = phys_vmem <= (64 << 20)

    # --- row tile -------------------------------------------------------------
    if n <= sub_mult:
        tn_eff = n                      # one full-rows tile (block == array dim)
    else:
        tn_cap = max(sub_mult, (tn // sub_mult) * sub_mult)
        # Ensure >= 2 row tiles whenever the row count allows it so the
        # "parallel" axis can be sharded across TensorCores (v7x megacore).
        tn_eff = min(tn_cap, _round_up(_cdiv(n, 2), sub_mult))

    # --- reduction tile -------------------------------------------------------
    tk_cap = max(128, (tk // 128) * 128)
    if small_vmem:
        # 512-1024+ lane tiles already reach ~85% of the HBM roofline; keep the
        # double-buffered working set well inside v7x's 64 MiB/TC.
        tk_cap = min(tk_cap, 2048)
    if d % 128 == 0:
        tk_eff = min(tk_cap, d)
    elif d <= tk_cap:
        tk_eff = d                      # short unaligned rows: one full-row block
    else:
        tk_eff = tk_cap                 # 128-aligned tiles + in-kernel tail mask

    # --- fit the double-buffered inputs inside the scoped-VMEM budget ----------
    input_budget = min(phys_vmem // 2, 48 << 20)

    def in_bytes(tn_, tk_):
        return 2 * 2 * tn_ * tk_ * elt  # 2 operands x 2 pipeline buffers

    if tk_eff % 128 == 0 and in_bytes(tn_eff, tk_eff) > input_budget:
        max_lanes = max(1, input_budget // (2 * 2 * tn_eff * elt * 128))
        tk_eff = max(128, min(tk_eff, max_lanes * 128))
    while in_bytes(tn_eff, tk_eff) > input_budget and tn_eff > sub_mult:
        new_tn = max(sub_mult, _round_up(tn_eff // 2, sub_mult))
        if new_tn >= tn_eff:
            break
        tn_eff = new_tn

    num_k = _cdiv(d, tk_eff)
    lanes_last_tile = d - (num_k - 1) * tk_eff
    grid = (_cdiv(n, tn_eff), num_k)

    # Working set: double-buffered inputs + (tn,128) f32 accumulator + output.
    # Chunk-wise fusion means no full-tile temporaries; the 4 MiB margin covers
    # compiler-internal scratch and per-chunk spill slack.
    work = in_bytes(tn_eff, tk_eff) + tn_eff * 128 * 4 + 2 * tn_eff * 4
    vmem_limit = int(min(max(phys_vmem - (8 << 20), 16 << 20),
                         max(32 << 20, work + (4 << 20))))

    cost = pl.CostEstimate(
        flops=3 * n * d,
        transcendentals=0,
        bytes_accessed=2 * n * d * elt + n * 4,
    )

    kernel = functools.partial(
        _mse_kernel, tk=tk_eff, inv_d=1.0 / float(d),
        lanes_last_tile=lanes_last_tile)

    out = pl.pallas_call(
        kernel,
        out_shape=jax.ShapeDtypeStruct((n, 1), jnp.float32),
        grid_spec=pltpu.PrefetchScalarGridSpec(
            num_scalar_prefetch=0,
            grid=grid,
            in_specs=[
                pl.BlockSpec((tn_eff, tk_eff), lambda i, k: (i, k)),
                pl.BlockSpec((tn_eff, tk_eff), lambda i, k: (i, k)),
            ],
            out_specs=pl.BlockSpec((tn_eff, 1), lambda i, k: (i, 0)),
            scratch_shapes=[pltpu.VMEM((tn_eff, 128), jnp.float32)],
        ),
        compiler_params=pltpu.CompilerParams(
            dimension_semantics=("parallel", "arbitrary"),
            vmem_limit_bytes=vmem_limit,
        ),
        cost_estimate=cost,
    )(r, g)

    return out.reshape(bs, obs)


if __name__ == "__main__":
    key = jax.random.PRNGKey(0)
    k1, k2, k3, k4, k5, k6, k7, k8 = jax.random.split(key, 8)

    # --- test 1: f32, 128-aligned reduction dim, single row/reduction tile ----
    bs, obs, c, h, w = 2, 3, 4, 16, 16
    ref1 = jax.random.normal(k1, (bs, obs, c, h, w), dtype=jnp.float32)
    gen1 = jax.random.normal(k2, (bs, obs, c, h, w), dtype=jnp.float32)
    out1 = jax.block_until_ready(mse(ref1, gen1))
    exp1 = jnp.mean((ref1 - gen1) ** 2, axis=(2, 3, 4))
    assert out1.shape == (bs, obs)
    assert jnp.allclose(out1, exp1, rtol=1e-5, atol=1e-6)

    # --- test 2: bf16 inputs, short non-128-aligned rows (in-kernel f32 cast) -
    ref2 = jax.random.normal(k3, (1, 2, 3, 5, 7), dtype=jnp.bfloat16)
    gen2 = jax.random.normal(k4, (1, 2, 3, 5, 7), dtype=jnp.bfloat16)
    out2 = jax.block_until_ready(mse(ref2, gen2))
    exp2 = jnp.mean(
        (ref2.astype(jnp.float32) - gen2.astype(jnp.float32)) ** 2, axis=(2, 3, 4))
    assert out2.shape == (1, 2)
    assert jnp.allclose(out2, exp2, rtol=1e-4, atol=1e-5)

    # --- test 3: row tiling with partial edge row blocks + even-128 k tail ----
    ref3 = jax.random.normal(k5, (4, 5, 2, 16, 16), dtype=jnp.float32)
    gen3 = jax.random.normal(k6, (4, 5, 2, 16, 16), dtype=jnp.float32)
    out3 = jax.block_until_ready(mse(ref3, gen3, tn=8, tk=384))
    exp3 = jnp.mean((ref3 - gen3) ** 2, axis=(2, 3, 4))
    assert out3.shape == (4, 5)
    assert jnp.allclose(out3, exp3, rtol=1e-5, atol=1e-6)

    # --- test 4: non-128-aligned tail chunk masked only on the last k-tile ----
    ref4 = jax.random.normal(k7, (3, 2, 3, 10, 12), dtype=jnp.float32)  # d=360
    gen4 = jax.random.normal(k8, (3, 2, 3, 10, 12), dtype=jnp.float32)
    out4 = jax.block_until_ready(mse(ref4, gen4, tk=256))
    exp4 = jnp.mean((ref4 - gen4) ** 2, axis=(2, 3, 4))
    assert out4.shape == (3, 2)
    assert jnp.allclose(out4, exp4, rtol=1e-5, atol=1e-6)

    print("KERNEL_OK")
</pallas_src>

<mosaic_0001>
module attributes {stable_mosaic.version = 11 : i64} {
  func.func @_mse_kernel(%arg0: i32, %arg1: i32, %arg2: memref<6x1024xf32, #tpu.memory_space<vmem>>, %arg3: memref<6x1024xf32, #tpu.memory_space<vmem>>, %arg4: memref<6x1xf32, #tpu.memory_space<vmem>>, %arg5: memref<6x128xf32, #tpu.memory_space<vmem>>) attributes {dimension_semantics = [#tpu.dimension_semantics<parallel>, #tpu.dimension_semantics<arbitrary>], iteration_bounds = array<i64: 1, 1>, scalar_prefetch = 0 : i64, scratch_operands = 1 : i64, tpu.core_type = #tpu.core_type<tc>, window_params = [{transform_indices = @transform_0, window_bounds = array<i64: 6, 1024>}, {transform_indices = @transform_1, window_bounds = array<i64: 6, 1024>}, {transform_indices = @transform_2, window_bounds = array<i64: 6, 1>}]} {
    %c0_i32 = arith.constant 0 : i32
    %0 = arith.cmpi eq, %arg1, %c0_i32 : i32
    %1 = arith.extui %0 : i1 to i32
    %c0_i32_0 = arith.constant 0 : i32
    %2 = arith.cmpi ne, %1, %c0_i32_0 : i32
    scf.if %2 {
      %cst = arith.constant 0.000000e+00 : f32
      %62 = vector.broadcast %cst : f32 to vector<6x128xf32>
      %c0_59 = arith.constant 0 : index
      %c0_60 = arith.constant 0 : index
      %63 = vector.load %arg5[%c0_59, %c0_60] : memref<6x128xf32, #tpu.memory_space<vmem>>, vector<6x128xf32>
      tpu.vector_store %arg5[%c0_59, %c0_60], %62 {strides = array<i32>} : memref<6x128xf32, #tpu.memory_space<vmem>>, vector<6x128xf32>,
    } else {
    }
    %c0 = arith.constant 0 : index
    %c0_1 = arith.constant 0 : index
    %3 = vector.load %arg2[%c0, %c0_1] : memref<6x1024xf32, #tpu.memory_space<vmem>>, vector<6x128xf32>
    %c0_2 = arith.constant 0 : index
    %c0_3 = arith.constant 0 : index
    %4 = vector.load %arg3[%c0_2, %c0_3] : memref<6x1024xf32, #tpu.memory_space<vmem>>, vector<6x128xf32>
    %5 = arith.subf %3, %4 : vector<6x128xf32>
    %c0_4 = arith.constant 0 : index
    %c0_5 = arith.constant 0 : index
    %6 = vector.load %arg5[%c0_4, %c0_5] : memref<6x128xf32, #tpu.memory_space<vmem>>, vector<6x128xf32>
    %7 = arith.mulf %5, %5 : vector<6x128xf32>
    %8 = arith.addf %6, %7 : vector<6x128xf32>
    %c0_6 = arith.constant 0 : index
    %c0_7 = arith.constant 0 : index
    %9 = vector.load %arg5[%c0_6, %c0_7] : memref<6x128xf32, #tpu.memory_space<vmem>>, vector<6x128xf32>
    tpu.vector_store %arg5[%c0_6, %c0_7], %8 {strides = array<i32>} : memref<6x128xf32, #tpu.memory_space<vmem>>, vector<6x128xf32>,
    %c0_8 = arith.constant 0 : index
    %c128 = arith.constant 128 : index
    %10 = vector.load %arg2[%c0_8, %c128] : memref<6x1024xf32, #tpu.memory_space<vmem>>, vector<6x128xf32>
    %c0_9 = arith.constant 0 : index
    %c128_10 = arith.constant 128 : index
    %11 = vector.load %arg3[%c0_9, %c128_10] : memref<6x1024xf32, #tpu.memory_space<vmem>>, vector<6x128xf32>
    %12 = arith.subf %10, %11 : vector<6x128xf32>
    %c0_11 = arith.constant 0 : index
    %c0_12 = arith.constant 0 : index
    %13 = vector.load %arg5[%c0_11, %c0_12] : memref<6x128xf32, #tpu.memory_space<vmem>>, vector<6x128xf32>
    %14 = arith.mulf %12, %12 : vector<6x128xf32>
    %15 = arith.addf %13, %14 : vector<6x128xf32>
    %c0_13 = arith.constant 0 : index
    %c0_14 = arith.constant 0 : index
    %16 = vector.load %arg5[%c0_13, %c0_14] : memref<6x128xf32, #tpu.memory_space<vmem>>, vector<6x128xf32>
    tpu.vector_store %arg5[%c0_13, %c0_14], %15 {strides = array<i32>} : memref<6x128xf32, #tpu.memory_space<vmem>>, vector<6x128xf32>,
    %c0_15 = arith.constant 0 : index
    %c256 = arith.constant 256 : index
    %17 = vector.load %arg2[%c0_15, %c256] : memref<6x1024xf32, #tpu.memory_space<vmem>>, vector<6x128xf32>
    %c0_16 = arith.constant 0 : index
    %c256_17 = arith.constant 256 : index
    %18 = vector.load %arg3[%c0_16, %c256_17] : memref<6x1024xf32, #tpu.memory_space<vmem>>, vector<6x128xf32>
    %19 = arith.subf %17, %18 : vector<6x128xf32>
    %c0_18 = arith.constant 0 : index
    %c0_19 = arith.constant 0 : index
    %20 = vector.load %arg5[%c0_18, %c0_19] : memref<6x128xf32, #tpu.memory_space<vmem>>, vector<6x128xf32>
    %21 = arith.mulf %19, %19 : vector<6x128xf32>
    %22 = arith.addf %20, %21 : vector<6x128xf32>
    %c0_20 = arith.constant 0 : index
    %c0_21 = arith.constant 0 : index
    %23 = vector.load %arg5[%c0_20, %c0_21] : memref<6x128xf32, #tpu.memory_space<vmem>>, vector<6x128xf32>
    tpu.vector_store %arg5[%c0_20, %c0_21], %22 {strides = array<i32>} : memref<6x128xf32, #tpu.memory_space<vmem>>, vector<6x128xf32>,
    %c0_22 = arith.constant 0 : index
    %c384 = arith.constant 384 : index
    %24 = vector.load %arg2[%c0_22, %c384] : memref<6x1024xf32, #tpu.memory_space<vmem>>, vector<6x128xf32>
    %c0_23 = arith.constant 0 : index
    %c384_24 = arith.constant 384 : index
    %25 = vector.load %arg3[%c0_23, %c384_24] : memref<6x1024xf32, #tpu.memory_space<vmem>>, vector<6x128xf32>
    %26 = arith.subf %24, %25 : vector<6x128xf32>
    %c0_25 = arith.constant 0 : index
    %c0_26 = arith.constant 0 : index
    %27 = vector.load %arg5[%c0_25, %c0_26] : memref<6x128xf32, #tpu.memory_space<vmem>>, vector<6x128xf32>
    %28 = arith.mulf %26, %26 : vector<6x128xf32>
    %29 = arith.addf %27, %28 : vector<6x128xf32>
    %c0_27 = arith.constant 0 : index
    %c0_28 = arith.constant 0 : index
    %30 = vector.load %arg5[%c0_27, %c0_28] : memref<6x128xf32, #tpu.memory_space<vmem>>, vector<6x128xf32>
    tpu.vector_store %arg5[%c0_27, %c0_28], %29 {strides = array<i32>} : memref<6x128xf32, #tpu.memory_space<vmem>>, vector<6x128xf32>,
    %c0_29 = arith.constant 0 : index
    %c512 = arith.constant 512 : index
    %31 = vector.load %arg2[%c0_29, %c512] : memref<6x1024xf32, #tpu.memory_space<vmem>>, vector<6x128xf32>
    %c0_30 = arith.constant 0 : index
    %c512_31 = arith.constant 512 : index
    %32 = vector.load %arg3[%c0_30, %c512_31] : memref<6x1024xf32, #tpu.memory_space<vmem>>, vector<6x128xf32>
    %33 = arith.subf %31, %32 : vector<6x128xf32>
    %c0_32 = arith.constant 0 : index
    %c0_33 = arith.constant 0 : index
    %34 = vector.load %arg5[%c0_32, %c0_33] : memref<6x128xf32, #tpu.memory_space<vmem>>, vector<6x128xf32>
    %35 = arith.mulf %33, %33 : vector<6x128xf32>
    %36 = arith.addf %34, %35 : vector<6x128xf32>
    %c0_34 = arith.constant 0 : index
    %c0_35 = arith.constant 0 : index
    %37 = vector.load %arg5[%c0_34, %c0_35] : memref<6x128xf32, #tpu.memory_space<vmem>>, vector<6x128xf32>
    tpu.vector_store %arg5[%c0_34, %c0_35], %36 {strides = array<i32>} : memref<6x128xf32, #tpu.memory_space<vmem>>, vector<6x128xf32>,
    %c0_36 = arith.constant 0 : index
    %c640 = arith.constant 640 : index
    %38 = vector.load %arg2[%c0_36, %c640] : memref<6x1024xf32, #tpu.memory_space<vmem>>, vector<6x128xf32>
    %c0_37 = arith.constant 0 : index
    %c640_38 = arith.constant 640 : index
    %39 = vector.load %arg3[%c0_37, %c640_38] : memref<6x1024xf32, #tpu.memory_space<vmem>>, vector<6x128xf32>
    %40 = arith.subf %38, %39 : vector<6x128xf32>
    %c0_39 = arith.constant 0 : index
    %c0_40 = arith.constant 0 : index
    %41 = vector.load %arg5[%c0_39, %c0_40] : memref<6x128xf32, #tpu.memory_space<vmem>>, vector<6x128xf32>
    %42 = arith.mulf %40, %40 : vector<6x128xf32>
    %43 = arith.addf %41, %42 : vector<6x128xf32>
    %c0_41 = arith.constant 0 : index
    %c0_42 = arith.constant 0 : index
    %44 = vector.load %arg5[%c0_41, %c0_42] : memref<6x128xf32, #tpu.memory_space<vmem>>, vector<6x128xf32>
    tpu.vector_store %arg5[%c0_41, %c0_42], %43 {strides = array<i32>} : memref<6x128xf32, #tpu.memory_space<vmem>>, vector<6x128xf32>,
    %c0_43 = arith.constant 0 : index
    %c768 = arith.constant 768 : index
    %45 = vector.load %arg2[%c0_43, %c768] : memref<6x1024xf32, #tpu.memory_space<vmem>>, vector<6x128xf32>
    %c0_44 = arith.constant 0 : index
    %c768_45 = arith.constant 768 : index
    %46 = vector.load %arg3[%c0_44, %c768_45] : memref<6x1024xf32, #tpu.memory_space<vmem>>, vector<6x128xf32>
    %47 = arith.subf %45, %46 : vector<6x128xf32>
    %c0_46 = arith.constant 0 : index
    %c0_47 = arith.constant 0 : index
    %48 = vector.load %arg5[%c0_46, %c0_47] : memref<6x128xf32, #tpu.memory_space<vmem>>, vector<6x128xf32>
    %49 = arith.mulf %47, %47 : vector<6x128xf32>
    %50 = arith.addf %48, %49 : vector<6x128xf32>
    %c0_48 = arith.constant 0 : index
    %c0_49 = arith.constant 0 : index
    %51 = vector.load %arg5[%c0_48, %c0_49] : memref<6x128xf32, #tpu.memory_space<vmem>>, vector<6x128xf32>
    tpu.vector_store %arg5[%c0_48, %c0_49], %50 {strides = array<i32>} : memref<6x128xf32, #tpu.memory_space<vmem>>, vector<6x128xf32>,
    %c0_50 = arith.constant 0 : index
    %c896 = arith.constant 896 : index
    %52 = vector.load %arg2[%c0_50, %c896] : memref<6x1024xf32, #tpu.memory_space<vmem>>, vector<6x128xf32>
    %c0_51 = arith.constant 0 : index
    %c896_52 = arith.constant 896 : index
    %53 = vector.load %arg3[%c0_51, %c896_52] : memref<6x1024xf32, #tpu.memory_space<vmem>>, vector<6x128xf32>
    %54 = arith.subf %52, %53 : vector<6x128xf32>
    %c0_53 = arith.constant 0 : index
    %c0_54 = arith.constant 0 : index
    %55 = vector.load %arg5[%c0_53, %c0_54] : memref<6x128xf32, #tpu.memory_space<vmem>>, vector<6x128xf32>
    %56 = arith.mulf %54, %54 : vector<6x128xf32>
    %57 = arith.addf %55, %56 : vector<6x128xf32>
    %c0_55 = arith.constant 0 : index
    %c0_56 = arith.constant 0 : index
    %58 = vector.load %arg5[%c0_55, %c0_56] : memref<6x128xf32, #tpu.memory_space<vmem>>, vector<6x128xf32>
    tpu.vector_store %arg5[%c0_55, %c0_56], %57 {strides = array<i32>} : memref<6x128xf32, #tpu.memory_space<vmem>>, vector<6x128xf32>,
    %c0_i32_57 = arith.constant 0 : i32
    %59 = arith.cmpi eq, %arg1, %c0_i32_57 : i32
    %60 = arith.extui %59 : i1 to i32
    %c0_i32_58 = arith.constant 0 : i32
    %61 = arith.cmpi ne, %60, %c0_i32_58 : i32
    scf.if %61 {
      %c0_59 = arith.constant 0 : index
      %c0_60 = arith.constant 0 : index
      %62 = vector.load %arg5[%c0_59, %c0_60] : memref<6x128xf32, #tpu.memory_space<vmem>>, vector<6x128xf32>
      %cst = arith.constant dense<0.000000e+00> : vector<6xf32>
      %63 = vector.multi_reduction <add>, %62, %cst [1] : vector<6x128xf32> to vector<6xf32>
      %64 = vector.shape_cast %63 : vector<6xf32> to vector<6x1xf32>
      %cst_61 = arith.constant 9.765625E-4 : f32
      %65 = vector.broadcast %cst_61 : f32 to vector<6x1xf32>
      %66 = arith.mulf %64, %65 : vector<6x1xf32>
      %c0_62 = arith.constant 0 : index
      %c0_63 = arith.constant 0 : index
      %67 = vector.load %arg4[%c0_62, %c0_63] : memref<6x1xf32, #tpu.memory_space<vmem>>, vector<6x1xf32>
      tpu.vector_store %arg4[%c0_62, %c0_63], %66 {strides = array<i32>} : memref<6x1xf32, #tpu.memory_space<vmem>>, vector<6x1xf32>,
    } else {
    }
    return
  }
  func.func @transform_0(%arg0: i32, %arg1: i32) -> (i32, i32) {
    %c0_i32 = arith.constant 0 : i32
    return %arg0, %arg1 : i32, i32
  }
  func.func @transform_1(%arg0: i32, %arg1: i32) -> (i32, i32) {
    %c0_i32 = arith.constant 0 : i32
    return %arg0, %arg1 : i32, i32
  }
  func.func @transform_2(%arg0: i32, %arg1: i32) -> (i32, i32) {
    %c0_i32 = arith.constant 0 : i32
    %c0_i32_0 = arith.constant 0 : i32
    return %arg0, %c0_i32 : i32, i32
  }
}

</mosaic_0001>

<llo_original>
// kernel: tpu_custom_call.1
$region0: #{tpu_custom_call.1}
  #allocation0 [shape = 'u32[]', space=smem, size = 0x4, offset = 0x4, fixed_abs, tag = 'smem constant byte address 0x4 - core index']
  #allocation1 [shape = 'u32[72,128]{1,0:T(1,128)}', space=vmem, size = 0x9000, scoped, tag = 'internal scratch']
  #allocation2 [shape = 'f32[6,128]{1,0:T(8,128)}', space=vmem, size = 0x1000, scoped, tag = 'scratch operand']
  %s0 = inlined_call_operand.hbm [shape: f32[6,1024], index: 0, kind: input, shape index: {}]
  %s1 = inlined_call_operand.hbm [shape: f32[6,1024], index: 1, kind: input, shape index: {}]
  %s2 = inlined_call_operand.vmem [shape: f32[6,1], index: 2, kind: output, shape index: {}]
  %s3 = sld [smem:[#allocation0]]
  $region34: #{tpu_custom_call.1} parent=0
    _
  %s5 = ssub.s32 1, %s3
  %s6 = scalar_select 0, %s5, %s3
  $region1: #{tpu_custom_call.1} parent=0
    #allocation3 [shape = 'u8[32768]{0}', space=vmem, size = 0x8000, scoped, tag = 'input window, operand 0, single buffered']
    #allocation4 [shape = 's32[1]{0}', space=sflag, size = 0x4, scoped, tag = 'scoped memory for tpu_custom_call.1']
    #allocation5 [shape = 'u8[32768]{0}', space=vmem, size = 0x8000, scoped, tag = 'input window, operand 1, single buffered']
    #allocation6 [shape = 's32[1]{0}', space=sflag, size = 0x4, scoped, tag = 'scoped memory for tpu_custom_call.1']
    %7 = vsyncpa [#allocation4], 0
    %8 = vsyncpa [#allocation6], 0
    // Predicated region
    $region2: #{tpu_custom_call.1} parent=1 // pred_check
      _
    $region3: #{tpu_custom_call.1} parent=1 // pred_check_branch
      %10 = sbr.rel (0) target = $region5
    $region4: #{tpu_custom_call.1} parent=1 // pred_region
      %12 = vsyncadd [#allocation4], 0
      %s14 = sshll.u32 %s0, 4
      %s15 = int_to_ptr.hbm [resolvable:$true] %s14
      %s16 = sshll.u32 [#allocation3], 4
      %s17 = int_to_ptr.vmem [resolvable:$true] %s16
      %19 = dma.hbm_to_vmem [thread:$0]  %s15, 1024, %s17, [#allocation4]
    $region5: #{tpu_custom_call.1} parent=1 // pred_fallthru
      _
    // Predicated region
    $region6: #{tpu_custom_call.1} parent=1 // pred_check
      _
    $region7: #{tpu_custom_call.1} parent=1 // pred_check_branch
      %21 = sbr.rel (0) target = $region9
    $region8: #{tpu_custom_call.1} parent=1 // pred_region
      %23 = vsyncadd [#allocation6], 0
      %s25 = sshll.u32 %s1, 4
      %s26 = int_to_ptr.hbm [resolvable:$true] %s25
      %s27 = sshll.u32 [#allocation5], 4
      %s28 = int_to_ptr.vmem [resolvable:$true] %s27
      %30 = dma.hbm_to_vmem [thread:$0]  %s26, 1024, %s28, [#allocation6]
    $region9: #{tpu_custom_call.1} parent=1 // pred_fallthru
      _
    // Predicated region
    $region10: #{tpu_custom_call.1} parent=1 // pred_check
      _
    $region11: #{tpu_custom_call.1} parent=1 // pred_check_branch
      %32 = sbr.rel (0) target = $region13
    $region12: #{tpu_custom_call.1} parent=1 // pred_region
      %34 = dma.done [#allocation4], 1024
    $region13: #{tpu_custom_call.1} parent=1 // pred_fallthru
      _
    // Predicated region
    $region14: #{tpu_custom_call.1} parent=1 // pred_check
      _
    $region15: #{tpu_custom_call.1} parent=1 // pred_check_branch
      %36 = sbr.rel (0) target = $region17
    $region16: #{tpu_custom_call.1} parent=1 // pred_region
      %38 = dma.done [#allocation6], 1024
    $region17: #{tpu_custom_call.1} parent=1 // pred_fallthru
      _
    %p39 = scmp.eq.s32.totalorder 0, 0
    // Predicated region
    $region18: #{tpu_custom_call.1} parent=1 // pred_check
      %p40 = pneg %p39
    $region19: #{tpu_custom_call.1} parent=1 // pred_check_branch
      %42 = sbr.rel (%p40) target = $region21
    $region20: #{tpu_custom_call.1} parent=1 // pred_region
      %43 = vst [vmem:[#allocation2] sm:$0x3f] 0.0
    $region21: #{tpu_custom_call.1} parent=1 // pred_fallthru
      _
    %v44 = vld [vmem:[#allocation3] sm:$0x3f]
    %v45 = vld [vmem:[#allocation5] sm:$0x3f]
    %v46 = vsub.f32 %v44, %v45
    %v47 = vld [vmem:[#allocation2] sm:$0x3f]
    %v48 = vmul.f32 %v46, %v46
    %v49 = vadd.f32 %v47, %v48
    %50 = vst [vmem:[#allocation2] sm:$0x3f] %v49
    %v51 = vld [vmem:[#allocation3 + $0x8] sm:$0x3f]
    %v52 = vld [vmem:[#allocation5 + $0x8] sm:$0x3f]
    %v53 = vsub.f32 %v51, %v52
    %v54 = vld [vmem:[#allocation2] sm:$0x3f]
    %v55 = vmul.f32 %v53, %v53
    %v56 = vadd.f32 %v54, %v55
    %57 = vst [vmem:[#allocation2] sm:$0x3f] %v56
    %v58 = vld [vmem:[#allocation3 + $0x10] sm:$0x3f]
    %v59 = vld [vmem:[#allocation5 + $0x10] sm:$0x3f]
    %v60 = vsub.f32 %v58, %v59
    %v61 = vld [vmem:[#allocation2] sm:$0x3f]
    %v62 = vmul.f32 %v60, %v60
    %v63 = vadd.f32 %v61, %v62
    %64 = vst [vmem:[#allocation2] sm:$0x3f] %v63
    %v65 = vld [vmem:[#allocation3 + $0x18] sm:$0x3f]
    %v66 = vld [vmem:[#allocation5 + $0x18] sm:$0x3f]
    %v67 = vsub.f32 %v65, %v66
    %v68 = vld [vmem:[#allocation2] sm:$0x3f]
    %v69 = vmul.f32 %v67, %v67
    %v70 = vadd.f32 %v68, %v69
    %71 = vst [vmem:[#allocation2] sm:$0x3f] %v70
    %v72 = vld [vmem:[#allocation3 + $0x20] sm:$0x3f]
    %v73 = vld [vmem:[#allocation5 + $0x20] sm:$0x3f]
    %v74 = vsub.f32 %v72, %v73
    %v75 = vld [vmem:[#allocation2] sm:$0x3f]
    %v76 = vmul.f32 %v74, %v74
    %v77 = vadd.f32 %v75, %v76
    %78 = vst [vmem:[#allocation2] sm:$0x3f] %v77
    %v79 = vld [vmem:[#allocation3 + $0x28] sm:$0x3f]
    %v80 = vld [vmem:[#allocation5 + $0x28] sm:$0x3f]
    %v81 = vsub.f32 %v79, %v80
    %v82 = vld [vmem:[#allocation2] sm:$0x3f]
    %v83 = vmul.f32 %v81, %v81
    %v84 = vadd.f32 %v82, %v83
    %85 = vst [vmem:[#allocation2] sm:$0x3f] %v84
    %v86 = vld [vmem:[#allocation3 + $0x30] sm:$0x3f]
    %v87 = vld [vmem:[#allocation5 + $0x30] sm:$0x3f]
    %v88 = vsub.f32 %v86, %v87
    %v89 = vld [vmem:[#allocation2] sm:$0x3f]
    %v90 = vmul.f32 %v88, %v88
    %v91 = vadd.f32 %v89, %v90
    %92 = vst [vmem:[#allocation2] sm:$0x3f] %v91
    %v93 = vld [vmem:[#allocation3 + $0x38] sm:$0x3f]
    %v94 = vld [vmem:[#allocation5 + $0x38] sm:$0x3f]
    %v95 = vsub.f32 %v93, %v94
    %v96 = vld [vmem:[#allocation2] sm:$0x3f]
    %v97 = vmul.f32 %v95, %v95
    %v98 = vadd.f32 %v96, %v97
    %99 = vst [vmem:[#allocation2] sm:$0x3f] %v98
    // Predicated region
    $region22: #{tpu_custom_call.1} parent=1 // pred_check
      %p100 = pneg %p39
    $region23: #{tpu_custom_call.1} parent=1 // pred_check_branch
      %102 = sbr.rel (%p100) target = $region25
    $region24: #{tpu_custom_call.1} parent=1 // pred_region
      %v103 = vld [vmem:[#allocation2] sm:$0x3f]
      %vm104 = vcmask 1045504
      %v105 = vsel %vm104, %v103, 0.0
      %106 = vadd.xlane.f32.xlu0 %v105
      %v107 = vpop.xlane.xlu0 %106
      %v108 = vmul.f32 %v107, 0.0009765625
      %vm109 = vcmask 5120
      %110 = vst.msk [vmem:[%s2] sm:$0x3f] %vm109, %v108
    $region25: #{tpu_custom_call.1} parent=1 // pred_fallthru
      _
    // Predicated region
    $region26: #{tpu_custom_call.1} parent=1 // pred_check
      _
    $region27: #{tpu_custom_call.1} parent=1 // pred_check_branch
      %112 = sbr.rel (0) target = $region29
    $region28: #{tpu_custom_call.1} parent=1 // pred_region
      _
    $region29: #{tpu_custom_call.1} parent=1 // pred_fallthru
      _
    // Predicated region
    $region30: #{tpu_custom_call.1} parent=1 // pred_check
      _
    $region31: #{tpu_custom_call.1} parent=1 // pred_check_branch
      %114 = sbr.rel (0) target = $region33
    $region32: #{tpu_custom_call.1} parent=1 // pred_region
      _
    $region33: #{tpu_custom_call.1} parent=1 // pred_fallthru
      _
    %115 = vsyncpa [#allocation4], 1
    %116 = vsyncpa [#allocation6], 1

</llo_original>
